<compile_context>
chip_gen: v5e
topology: v5e:2x2
jax: 0.10.0
libtpu: 0.0.40
codegen_flags: <defaults>
</compile_context>

<pallas_src>
import functools
import numpy as np
import jax
import jax.numpy as jnp
from jax.experimental import pallas as pl
from jax.experimental.pallas import tpu as pltpu


_SQRT2 = float(np.sqrt(2.0))
# bias_act gains for the supported activations.
_ACT_GAINS = {"linear": 1.0, "relu": _SQRT2, "lrelu": _SQRT2}


def _apply_act(acc, activation):
    # Activation gain is already folded into the accumulator scale / bias (legal because
    # relu/lrelu are positively homogeneous), so only the nonlinearity itself runs here.
    if activation == "linear":
        return acc
    if activation == "relu":
        return jnp.maximum(acc, jnp.float32(0.0))
    if activation == "lrelu":
        return jnp.where(acc >= 0.0, acc, acc * jnp.float32(0.2))
    # TODO(synk): other bias_act activations (sigmoid/tanh/swish/elu/...) not wired up.
    raise ValueError(f"Unsupported activation inside kernel: {activation!r}")


def _fc_bias_kernel(x_ref, w_ref, b_ref, o_ref, *, out_scale, activation):
    # x_ref: (TM, K)  w_ref: (K, TN)  b_ref: (1, TN)  o_ref: (TM, TN)
    acc = jax.lax.dot_general(
        x_ref[...], w_ref[...],
        dimension_numbers=(((1,), (0,)), ((), ())),
        preferred_element_type=jnp.float32,
    )
    # Scale the (TM, TN) result instead of the (K, TN) weight; bias is pre-scaled on host.
    acc = acc * jnp.float32(out_scale) + b_ref[...].astype(jnp.float32)
    o_ref[...] = _apply_act(acc, activation).astype(o_ref.dtype)


def _fc_nobias_kernel(x_ref, w_ref, o_ref, *, out_scale, activation):
    acc = jax.lax.dot_general(
        x_ref[...], w_ref[...],
        dimension_numbers=(((1,), (0,)), ((), ())),
        preferred_element_type=jnp.float32,
    )
    acc = acc * jnp.float32(out_scale)
    o_ref[...] = _apply_act(acc, activation).astype(o_ref.dtype)


def _round_up(x, m):
    return (x + m - 1) // m * m


def fully_connected(x, weight, bias, *, lr_multiplier=1.0, activation="linear",
                    compute_dtype=None):
    """Pallas TPU implementation of FullyConnectedLayer.forward.

    x:      (M, K) float32
    weight: (N, K) float32  (out_features, in_features) — PyTorch nn.Linear convention
    bias:   (N,)   float32 or None
    compute_dtype: optional dtype for the matmul operands (e.g. jnp.bfloat16);
                   accumulation and the bias/activation epilogue stay in float32.
    """
    M, K = x.shape
    N, K2 = weight.shape
    assert K == K2, (K, K2)
    if activation not in _ACT_GAINS:
        raise ValueError(f"Unsupported activation: {activation!r}")

    act_gain = _ACT_GAINS[activation]
    weight_gain = float(lr_multiplier) / float(np.sqrt(K))
    bias_gain = float(lr_multiplier)
    # Fold the activation gain into the pre-activation scale (valid: relu/lrelu are
    # positively homogeneous, linear trivially).
    out_scale = weight_gain * act_gain

    out_dtype = x.dtype
    compute_dtype = compute_dtype or x.dtype

    # Tile sizes: lane-dense N tiles (multiple of 128), sublane-aligned M tiles (mult of 8).
    TILE_N = min(_round_up(N, 128), 512)
    TILE_M = min(_round_up(M, 8), 256)
    N_pad = _round_up(N, TILE_N)
    M_pad = _round_up(M, TILE_M)
    grid_n = N_pad // TILE_N
    grid_m = M_pad // TILE_M

    # Pre-transpose weight to (K, N) on the host side (cheap XLA op) so the MXU sees a
    # standard contraction and the output lane dim is N.
    w_t = jnp.transpose(weight).astype(compute_dtype)
    if N_pad != N:
        w_t = jnp.pad(w_t, ((0, 0), (0, N_pad - N)))
    x_p = x.astype(compute_dtype)
    if M_pad != M:
        x_p = jnp.pad(x_p, ((0, M_pad - M), (0, 0)))

    operands = [x_p, w_t]
    in_specs = [
        pl.BlockSpec((TILE_M, K), lambda j, i: (i, 0)),      # x: varies with M axis only
        pl.BlockSpec((K, TILE_N), lambda j, i: (0, j)),      # w: resident across fast M axis
    ]

    if bias is not None:
        # Fold bias_gain and the activation gain into the bias on the host.
        b = (bias.astype(jnp.float32) * (bias_gain * act_gain)).reshape(1, N)
        if N_pad != N:
            b = jnp.pad(b, ((0, 0), (0, N_pad - N)))
        operands.append(b)
        in_specs.append(pl.BlockSpec((1, TILE_N), lambda j, i: (0, j)))
        kernel = functools.partial(_fc_bias_kernel, out_scale=out_scale,
                                   activation=activation)
    else:
        kernel = functools.partial(_fc_nobias_kernel, out_scale=out_scale,
                                   activation=activation)

    out = pl.pallas_call(
        kernel,
        out_shape=jax.ShapeDtypeStruct((M_pad, N_pad), out_dtype),
        # Grid order (N-blocks, M-blocks): M is the fastest axis, so the weight block is
        # only (re-)fetched when the N block changes and stays resident while sweeping M.
        grid=(grid_n, grid_m),
        in_specs=in_specs,
        out_specs=pl.BlockSpec((TILE_M, TILE_N), lambda j, i: (i, j)),
        compiler_params=pltpu.CompilerParams(
            dimension_semantics=("parallel", "parallel"),
            vmem_limit_bytes=32 * 1024 * 1024,
        ),
    )(*operands)

    if M_pad != M or N_pad != N:
        out = out[:M, :N]
    return out


def fully_connected_ref(x, weight, bias, *, lr_multiplier=1.0, activation="linear"):
    """Pure-JAX reference mirroring the PyTorch forward."""
    K = x.shape[1]
    w = weight.astype(jnp.float32) * (lr_multiplier / np.sqrt(K))
    y = jnp.matmul(x.astype(jnp.float32), w.T, precision=jax.lax.Precision.HIGHEST)
    if bias is not None:
        y = y + bias.astype(jnp.float32) * lr_multiplier
    if activation == "lrelu":
        y = jnp.where(y >= 0, y, 0.2 * y) * _SQRT2
    elif activation == "relu":
        y = jnp.maximum(y, 0.0) * _SQRT2
    return y.astype(x.dtype)


if __name__ == "__main__":
    key = jax.random.PRNGKey(0)
    k_x, k_w, k_x2, k_w2, k_b2 = jax.random.split(key, 5)

    # ---- Small shapes implied by the module: batch=8, in_features=32, out_features=64 ----
    M, K, N = 8, 32, 64
    lr_multiplier = 0.01
    bias_init = 1.0

    x = jax.random.normal(k_x, (M, K), dtype=jnp.float32)
    # Deterministic parameter init matching __init__:
    #   weight = randn(out, in) / lr_multiplier ; bias = full(out, bias_init)
    weight = jax.random.normal(k_w, (N, K), dtype=jnp.float32) / lr_multiplier
    bias = jnp.full((N,), np.float32(bias_init))

    # lrelu path
    y = jax.block_until_ready(
        fully_connected(x, weight, bias, lr_multiplier=lr_multiplier, activation="lrelu"))
    y_ref = fully_connected_ref(x, weight, bias, lr_multiplier=lr_multiplier,
                                activation="lrelu")
    np.testing.assert_allclose(np.asarray(y), np.asarray(y_ref), rtol=1e-4, atol=1e-4)

    # linear (addmm) path
    y_lin = jax.block_until_ready(
        fully_connected(x, weight, bias, lr_multiplier=lr_multiplier, activation="linear"))
    y_lin_ref = fully_connected_ref(x, weight, bias, lr_multiplier=lr_multiplier,
                                    activation="linear")
    np.testing.assert_allclose(np.asarray(y_lin), np.asarray(y_lin_ref),
                               rtol=1e-4, atol=1e-4)

    # bias=None path (separate kernel variant, no zero-bias work)
    y_nb = jax.block_until_ready(
        fully_connected(x, weight, None, lr_multiplier=lr_multiplier, activation="lrelu"))
    y_nb_ref = fully_connected_ref(x, weight, None, lr_multiplier=lr_multiplier,
                                   activation="lrelu")
    np.testing.assert_allclose(np.asarray(y_nb), np.asarray(y_nb_ref),
                               rtol=1e-4, atol=1e-4)

    # ---- StyleGAN-mapping-network-like shape to exercise the real grid / tiling ----
    M2, K2, N2 = 512, 512, 512
    x2 = jax.random.normal(k_x2, (M2, K2), dtype=jnp.float32)
    w2 = jax.random.normal(k_w2, (N2, K2), dtype=jnp.float32)
    b2 = jax.random.normal(k_b2, (N2,), dtype=jnp.float32)

    y2 = jax.block_until_ready(
        fully_connected(x2, w2, b2, lr_multiplier=1.0, activation="lrelu"))
    y2_ref = fully_connected_ref(x2, w2, b2, lr_multiplier=1.0, activation="lrelu")
    np.testing.assert_allclose(np.asarray(y2), np.asarray(y2_ref), rtol=1e-4, atol=1e-4)

    # bf16 MXU operands with f32 accumulation + f32 epilogue (loose tolerance).
    y2_bf16 = jax.block_until_ready(
        fully_connected(x2, w2, b2, lr_multiplier=1.0, activation="lrelu",
                        compute_dtype=jnp.bfloat16))
    np.testing.assert_allclose(np.asarray(y2_bf16), np.asarray(y2_ref),
                               rtol=1e-1, atol=1e-1)

    print("KERNEL_OK")
</pallas_src>

<mosaic_0001>
module attributes {stable_mosaic.version = 11 : i64} {
  func.func @_fc_bias_kernel(%arg0: i32, %arg1: i32, %arg2: memref<8x32xf32, #tpu.memory_space<vmem>>, %arg3: memref<32x128xf32, #tpu.memory_space<vmem>>, %arg4: memref<1x128xf32, #tpu.memory_space<vmem>>, %arg5: memref<8x128xf32, #tpu.memory_space<vmem>>) attributes {dimension_semantics = [#tpu.dimension_semantics<parallel>, #tpu.dimension_semantics<parallel>], iteration_bounds = array<i64: 1, 1>, scalar_prefetch = 0 : i64, scratch_operands = 0 : i64, tpu.core_type = #tpu.core_type<tc>, window_params = [{transform_indices = @transform_0, window_bounds = array<i64: 8, 32>}, {transform_indices = @transform_1, window_bounds = array<i64: 32, 128>}, {transform_indices = @transform_2, window_bounds = array<i64: 1, 128>}, {transform_indices = @transform_3, window_bounds = array<i64: 8, 128>}]} {
    %c0 = arith.constant 0 : index
    %c0_0 = arith.constant 0 : index
    %0 = vector.load %arg2[%c0, %c0_0] : memref<8x32xf32, #tpu.memory_space<vmem>>, vector<8x32xf32>
    %c0_1 = arith.constant 0 : index
    %c0_2 = arith.constant 0 : index
    %1 = vector.load %arg3[%c0_1, %c0_2] : memref<32x128xf32, #tpu.memory_space<vmem>>, vector<32x128xf32>
    %cst = arith.constant dense<0.000000e+00> : vector<8x128xf32>
    %2 = tpu.matmul %0, %1, %cst {dimension_numbers = #tpu.dot_dimension_numbers<[1], [0], [0], [1], [0, 0, 1, 1], [], []>} : vector<8x32xf32>, vector<32x128xf32>, vector<8x128xf32> -> vector<8x128xf32>
    %cst_3 = arith.constant 2.500000e-03 : f32
    %3 = vector.broadcast %cst_3 : f32 to vector<8x128xf32>
    %4 = arith.mulf %2, %3 : vector<8x128xf32>
    %c0_4 = arith.constant 0 : index
    %c0_5 = arith.constant 0 : index
    %5 = vector.load %arg4[%c0_4, %c0_5] : memref<1x128xf32, #tpu.memory_space<vmem>>, vector<1x128xf32>
    %6 = vector.broadcast %5 : vector<1x128xf32> to vector<8x128xf32>
    %7 = arith.addf %4, %6 : vector<8x128xf32>
    %cst_6 = arith.constant 0.000000e+00 : f32
    %8 = vector.broadcast %cst_6 : f32 to vector<8x128xf32>
    %9 = arith.cmpf oge, %7, %8 : vector<8x128xf32>
    %cst_7 = arith.constant 2.000000e-01 : f32
    %10 = vector.broadcast %cst_7 : f32 to vector<8x128xf32>
    %11 = arith.mulf %7, %10 : vector<8x128xf32>
    %12 = arith.select %9, %7, %11 : vector<8x128xi1>, vector<8x128xf32>
    %c0_8 = arith.constant 0 : index
    %c0_9 = arith.constant 0 : index
    %13 = vector.load %arg5[%c0_8, %c0_9] : memref<8x128xf32, #tpu.memory_space<vmem>>, vector<8x128xf32>
    tpu.vector_store %arg5[%c0_8, %c0_9], %12 {strides = array<i32>} : memref<8x128xf32, #tpu.memory_space<vmem>>, vector<8x128xf32>,
    return
  }
  func.func @transform_0(%arg0: i32, %arg1: i32) -> (i32, i32) {
    %c0_i32 = arith.constant 0 : i32
    %c0_i32_0 = arith.constant 0 : i32
    return %arg1, %c0_i32 : i32, i32
  }
  func.func @transform_1(%arg0: i32, %arg1: i32) -> (i32, i32) {
    %c0_i32 = arith.constant 0 : i32
    %c0_i32_0 = arith.constant 0 : i32
    return %c0_i32, %arg0 : i32, i32
  }
  func.func @transform_2(%arg0: i32, %arg1: i32) -> (i32, i32) {
    %c0_i32 = arith.constant 0 : i32
    %c0_i32_0 = arith.constant 0 : i32
    return %c0_i32, %arg0 : i32, i32
  }
  func.func @transform_3(%arg0: i32, %arg1: i32) -> (i32, i32) {
    %c0_i32 = arith.constant 0 : i32
    return %arg1, %arg0 : i32, i32
  }
}

</mosaic_0001>

<llo_original>
// kernel: tpu_custom_call.1
$region0: #{tpu_custom_call.1}
  #allocation0 [shape = 'u32[]', space=smem, size = 0x4, offset = 0x4, fixed_abs, tag = 'smem constant byte address 0x4 - core index']
  #allocation1 [shape = 'u32[72,128]{1,0:T(1,128)}', space=vmem, size = 0x9000, scoped, tag = 'internal scratch']
  %s0 = inlined_call_operand.hbm [shape: f32[8,32], index: 0, kind: input, shape index: {}]
  %s1 = inlined_call_operand.hbm [shape: f32[32,128], index: 1, kind: input, shape index: {}]
  %s2 = inlined_call_operand.vmem [shape: f32[1,128], index: 2, kind: input, shape index: {}]
  %s3 = inlined_call_operand.hbm [shape: f32[8,128], index: 3, kind: output, shape index: {}]
  %s4 = sld [smem:[#allocation0]]
  $region30: #{tpu_custom_call.1} parent=0
    _
  %s6 = ssub.s32 1, %s4
  %s7 = scalar_select 0, %s6, %s4
  $region1: #{tpu_custom_call.1} parent=0
    #allocation2 [shape = 'u8[4096]{0}', space=vmem, size = 0x1000, scoped, tag = 'input window, operand 0, single buffered']
    #allocation3 [shape = 's32[1]{0}', space=sflag, size = 0x4, scoped, tag = 'scoped memory for tpu_custom_call.1']
    #allocation4 [shape = 's32[1]{0}', space=sflag, size = 0x4, scoped, tag = 'scoped memory for tpu_custom_call.1']
    #allocation5 [shape = 'u8[16384]{0}', space=vmem, size = 0x4000, scoped, tag = 'input window, operand 1, single buffered']
    #allocation6 [shape = 's32[1]{0}', space=sflag, size = 0x4, scoped, tag = 'scoped memory for tpu_custom_call.1']
    #allocation7 [shape = 'u8[4096]{0}', space=vmem, size = 0x1000, scoped, tag = 'output window, operand 0, single buffered']
    %8 = vsyncpa [#allocation3], 0
    %9 = vsyncpa [#allocation6], 0
    %10 = vsyncpa [#allocation4], 0
    // Predicated region
    $region2: #{tpu_custom_call.1} parent=1 // pred_check
      _
    $region3: #{tpu_custom_call.1} parent=1 // pred_check_branch
      %12 = sbr.rel (0) target = $region5
    $region4: #{tpu_custom_call.1} parent=1 // pred_region
      %14 = vsyncadd [#allocation3], 0
      %s16 = sshll.u32 %s0, 4
      %s17 = int_to_ptr.hbm [resolvable:$true] %s16
      %s18 = sshll.u32 [#allocation2], 4
      %s19 = int_to_ptr.vmem [resolvable:$true] %s18
      %21 = dma.hbm_to_vmem [thread:$0]  %s17, 128, %s19, [#allocation3]
    $region5: #{tpu_custom_call.1} parent=1 // pred_fallthru
      _
    // Predicated region
    $region6: #{tpu_custom_call.1} parent=1 // pred_check
      _
    $region7: #{tpu_custom_call.1} parent=1 // pred_check_branch
      %23 = sbr.rel (0) target = $region9
    $region8: #{tpu_custom_call.1} parent=1 // pred_region
      %25 = vsyncadd [#allocation6], 0
      %s26 = sshll.u32 %s1, 4
      %s27 = int_to_ptr.hbm [resolvable:$true] %s26
      %s28 = sshll.u32 [#allocation5], 4
      %s29 = int_to_ptr.vmem [resolvable:$true] %s28
      %34 = dma.hbm_to_vmem [thread:$0]  %s27, 512, %s29, [#allocation6], 128, 128, 8
    $region9: #{tpu_custom_call.1} parent=1 // pred_fallthru
      _
    // Predicated region
    $region10: #{tpu_custom_call.1} parent=1 // pred_check
      _
    $region11: #{tpu_custom_call.1} parent=1 // pred_check_branch
      %36 = sbr.rel (0) target = $region13
    $region12: #{tpu_custom_call.1} parent=1 // pred_region
      _
    $region13: #{tpu_custom_call.1} parent=1 // pred_fallthru
      _
    // Predicated region
    $region14: #{tpu_custom_call.1} parent=1 // pred_check
      _
    $region15: #{tpu_custom_call.1} parent=1 // pred_check_branch
      %38 = sbr.rel (0) target = $region17
    $region16: #{tpu_custom_call.1} parent=1 // pred_region
      %40 = dma.done [#allocation3], 128
    $region17: #{tpu_custom_call.1} parent=1 // pred_fallthru
      _
    // Predicated region
    $region18: #{tpu_custom_call.1} parent=1 // pred_check
      _
    $region19: #{tpu_custom_call.1} parent=1 // pred_check_branch
      %42 = sbr.rel (0) target = $region21
    $region20: #{tpu_custom_call.1} parent=1 // pred_region
      %44 = dma.done [#allocation6], 512
    $region21: #{tpu_custom_call.1} parent=1 // pred_fallthru
      _
    %v45 = vld [vmem:[#allocation2] sm:$0xff]
    %v46 = vld [vmem:[#allocation5] sm:$0xff]
    %v47 = vld [vmem:[#allocation5 + $0x8] sm:$0xff]
    %v48 = vld [vmem:[#allocation5 + $0x10] sm:$0xff]
    %v49 = vld [vmem:[#allocation5 + $0x18] sm:$0xff]
    %vm50 = vcmask 261120
    %v52 = vsel %vm50, %v45, 0
    %54 = vmatpush.msra.mxu0 0.0
    %55 = vmatpush.msra.mxu0 0.0
    %56 = vmatpush.msra.mxu0 0.0
    %57 = vmatpush.msra.mxu0 0.0
    %58 = vmatpush.msra.mxu0 0.0
    %59 = vmatpush.msra.mxu0 0.0
    %60 = vmatpush.msra.mxu0 0.0
    %61 = vmatpush.msra.mxu0 0.0
    %62 = vmatpush.msra.mxu0 0.0
    %63 = vmatpush.msra.mxu0 0.0
    %64 = vmatpush.msra.mxu0 0.0
    %65 = vmatpush.msra.mxu0 0.0
    %66 = vmatpush.msra.mxu0 %v49
    %67 = vmatpush.msra.mxu0 %v48
    %68 = vmatpush.msra.mxu0 %v47
    %69 = vmatpush.msra.mxu0 %v46
    %70 = vmatmul.f32.gmra.mxu0 %v52
    %v71 = vpop.f32.mrf.mxu0
    %v72 = vadd.f32 0.0, %v71
    %73 = vdwg.mxu0
    %v74 = vmul.f32 %v72, 0.0025
    %v75 = vld [vmem:[%s2] sm:$0x1]
    %v77 = vperm.slane %v75, 0
    %v79 = vadd.f32 %v74, %v77
    %vm80 = vcmp.ge.f32.partialorder %v79, 0.0
    %v81 = vmul.f32 %v79, 0.2
    %v82 = vsel %vm80, %v79, %v81
    %83 = vst [vmem:[#allocation7] sm:$0xff] %v82
    // Predicated region
    $region22: #{tpu_custom_call.1} parent=1 // pred_check
      _
    $region23: #{tpu_custom_call.1} parent=1 // pred_check_branch
      %85 = sbr.rel (0) target = $region25
    $region24: #{tpu_custom_call.1} parent=1 // pred_region
      %87 = vsyncadd [#allocation4], 0
      %s89 = sshll.u32 [#allocation7], 4
      %s90 = int_to_ptr.vmem [resolvable:$true] %s89
      %s91 = sshll.u32 %s3, 4
      %s92 = int_to_ptr.hbm [resolvable:$true] %s91
      %94 = dma.vmem_to_hbm [thread:$0]  %s90, 128, %s92, [#allocation4]
    $region25: #{tpu_custom_call.1} parent=1 // pred_fallthru
      _
    // Predicated region
    $region26: #{tpu_custom_call.1} parent=1 // pred_check
      _
    $region27: #{tpu_custom_call.1} parent=1 // pred_check_branch
      %96 = sbr.rel (0) target = $region29
    $region28: #{tpu_custom_call.1} parent=1 // pred_region
      %98 = dma.done [#allocation4], 128
    $region29: #{tpu_custom_call.1} parent=1 // pred_fallthru
      _
    %99 = vsyncpa [#allocation3], 1
    %100 = vsyncpa [#allocation6], 1
    %101 = vsyncpa [#allocation4], 1

</llo_original>
